<compile_context>
chip_gen: v7x
topology: tpu7x:2x2x1
jax: 0.10.0
libtpu: 0.0.40
codegen_flags: <defaults>
</compile_context>

<pallas_src>
import functools

import jax
import jax.numpy as jnp
from jax.experimental import pallas as pl
from jax.experimental.pallas import tpu as pltpu


def _booleanf_kernel(x_ref, g_ref, c_ref, o_ref, *, t, k):
    """native-dtype |x|>=t -> per-group ANY (MXU counts) -> per-row ALL."""
    # (TB, r*F) 0/1 hit mask, compare in x's native dtype (matches PyTorch).
    m = (jnp.abs(x_ref[...]) >= t).astype(jnp.bfloat16)
    # Per-group hit counts: one MXU matmul against the resident block-diagonal
    # (r*F, r*k) bf16 membership matrix (exact 0/1 operands, f32 accumulate).
    gs = jnp.dot(m, g_ref[...], preferred_element_type=jnp.float32)     # (TB, r*k)
    hit = (gs >= 0.5).astype(jnp.bfloat16)                              # group ANY flags
    # Per-logical-row number of groups hit via the (r*k, r) collapse matmul.
    cnt = jnp.dot(hit, c_ref[...], preferred_element_type=jnp.float32)  # (TB, r)
    # ALL groups hit  <=>  count == k  <=>  count >= k - 0.5  (exact integers).
    o_ref[...] = (cnt >= (k - 0.5)).astype(jnp.float32)


def _round_up(v: int, m: int) -> int:
    return ((v + m - 1) // m) * m


def boolean_f(x: jax.Array, n: int, t: float, *,
              block_rows: int | None = None) -> jax.Array:
    """Pallas implementation of BooleanF(n, t).forward(x) for 2-D x."""
    B, F = x.shape
    k = F // n
    if k == 0:
        # unfold yields zero windows; all() over an empty dim is True.
        return jnp.ones((B,), jnp.float32)
    F_used = k * n
    elem = jnp.dtype(x.dtype).itemsize

    # ---- small-F lane packing: r logical rows per physical row (free reshape).
    r = 1
    if F < 128 and 128 % F == 0:
        r_cand = 128 // F
        if r_cand > 1 and B % r_cand == 0:
            r = r_cand
    Bp = B // r
    row_elems = r * F

    # ---- resident bf16 matrices (remainder feature rows are zero -> dropped).
    f_idx = jnp.arange(F)
    base = ((f_idx[:, None] // n == jnp.arange(k)[None, :])
            & (f_idx[:, None] < F_used)).astype(jnp.bfloat16)            # (F, k)
    if r > 1:
        eye_r = jnp.eye(r, dtype=jnp.bfloat16)
        groups = jnp.kron(eye_r, base)                                   # (r*F, r*k)
        collapse = jnp.kron(eye_r, jnp.ones((k, 1), jnp.bfloat16))       # (r*k, r)
    else:
        groups = base
        collapse = jnp.ones((k, 1), jnp.bfloat16)

    # ---- generation-aware VMEM budget (v5e/v6e: 128 MiB, v7x: 64 MiB).
    try:
        vmem_cap = int(pltpu.get_tpu_info().vmem_capacity_bytes)
    except Exception:
        vmem_cap = 64 << 20                        # conservative (v7x) fallback
    vmem_budget = min(vmem_cap * 3 // 4, 96 << 20)

    # Double-buffered residents + per-row cost (2x input buf, bf16 mask,
    # f32 group sums, 2x f32 output).
    resident = 2 * int(groups.size) * 2 + 2 * int(collapse.size) * 2
    per_row = 2 * row_elems * elem + row_elems * 2 + (r * k) * 4 + 2 * r * 4

    if block_rows is None:
        by_vmem = max(8, (vmem_budget - resident) // per_row)
        by_dma = max(8, (8 << 20) // (row_elems * elem))    # ~8 MiB / input buffer
        two_steps = _round_up(max(1, pl.cdiv(Bp, 2)), 8)    # >=2 grid steps (v7x 2 TCs)
        block_rows = min(by_vmem, by_dma, two_steps, _round_up(Bp, 8))
    tb = max(8, (int(block_rows) // 8) * 8)

    x_packed = x.reshape(Bp, row_elems)                      # row-major, no copy

    kernel = functools.partial(_booleanf_kernel, t=float(t), k=k)

    cost = pl.CostEstimate(
        flops=2 * Bp * row_elems * (r * k) + 2 * Bp * (r * k) * r,
        transcendentals=0,
        bytes_accessed=B * F * elem + int(groups.size) * 2
                       + int(collapse.size) * 2 + B * 4,
    )

    out = pl.pallas_call(
        kernel,
        out_shape=jax.ShapeDtypeStruct((Bp, r), jnp.float32),
        grid=(pl.cdiv(Bp, tb),),
        in_specs=[
            pl.BlockSpec((tb, row_elems), lambda i: (i, 0)),   # batch-tiled input
            pl.BlockSpec((row_elems, r * k), lambda i: (0, 0)),  # resident membership
            pl.BlockSpec((r * k, r), lambda i: (0, 0)),          # resident collapse
        ],
        out_specs=pl.BlockSpec((tb, r), lambda i: (i, 0)),
        compiler_params=pltpu.CompilerParams(
            dimension_semantics=("parallel",),
            vmem_limit_bytes=int(vmem_budget),
        ),
        cost_estimate=cost,
    )(x_packed, groups, collapse)
    return out.reshape(B)                                      # (B,) float32


def _boolean_f_ref(x, n, t):
    """Pure-JAX reference mirroring the PyTorch module (incl. remainder drop)."""
    B, F = x.shape
    k = F // n
    if k == 0:
        return jnp.ones((B,), jnp.float32)
    m = jnp.abs(x[:, : k * n]) >= t
    m3 = m.reshape(B, k, n)
    return jnp.all(jnp.any(m3, axis=2), axis=1).astype(jnp.float32)


if __name__ == "__main__":
    key0, key1, key2 = jax.random.split(jax.random.PRNGKey(0), 3)

    # Case 1: shapes consistent with the module (batch=8, features=32, n=4, t=1.0);
    # exercises the small-F lane-packing path (r = 128 // 32 = 4).
    n, t = 4, 1.0
    B, F = 8, 32
    x = jax.random.normal(key0, (B, F), dtype=jnp.float32)
    out = jax.block_until_ready(boolean_f(x, n, t))
    ref = _boolean_f_ref(x, n, t)
    assert out.shape == (B,)
    assert out.dtype == jnp.float32
    assert jnp.array_equal(out, ref), (out, ref)

    # Case 2: multi-tile grid with a partial tail block (B % TB != 0) and a
    # feature remainder (F % n != 0, dropped via zeroed membership rows).
    B2, F2, n2, t2 = 20, 26, 4, 0.7
    x2 = jax.random.normal(key1, (B2, F2), dtype=jnp.float32)
    out2 = jax.block_until_ready(boolean_f(x2, n2, t2, block_rows=8))
    ref2 = _boolean_f_ref(x2, n2, t2)
    assert out2.shape == (B2,)
    assert jnp.array_equal(out2, ref2), (out2, ref2)

    # Case 3: bf16 input -- native-dtype compare path (matches PyTorch dtype
    # semantics), packed layout again (r = 4).
    B3, F3, n3, t3 = 16, 32, 8, 0.9
    x3 = jax.random.normal(key2, (B3, F3), dtype=jnp.bfloat16)
    out3 = jax.block_until_ready(boolean_f(x3, n3, t3))
    ref3 = _boolean_f_ref(x3, n3, t3)
    assert out3.shape == (B3,)
    assert jnp.array_equal(out3, ref3), (out3, ref3)

    print("KERNEL_OK")
</pallas_src>

<mosaic_0001>
module attributes {stable_mosaic.version = 11 : i64} {
  func.func @_booleanf_kernel(%arg0: i32, %arg1: memref<8x128xf32, #tpu.memory_space<vmem>>, %arg2: memref<128x32xbf16, #tpu.memory_space<vmem>>, %arg3: memref<32x4xbf16, #tpu.memory_space<vmem>>, %arg4: memref<8x4xf32, #tpu.memory_space<vmem>>) attributes {dimension_semantics = [#tpu.dimension_semantics<parallel>], iteration_bounds = array<i64: 1>, scalar_prefetch = 0 : i64, scratch_operands = 0 : i64, tpu.core_type = #tpu.core_type<tc>, window_params = [{transform_indices = @transform_0, window_bounds = array<i64: 8, 128>}, {pipeline_mode = #tpu.pipeline_mode<synchronous>, transform_indices = @transform_1, window_bounds = array<i64: 128, 32>}, {pipeline_mode = #tpu.pipeline_mode<synchronous>, transform_indices = @transform_2, window_bounds = array<i64: 32, 4>}, {transform_indices = @transform_3, window_bounds = array<i64: 8, 4>}]} {
    %c0 = arith.constant 0 : index
    %c0_0 = arith.constant 0 : index
    %0 = vector.load %arg1[%c0, %c0_0] : memref<8x128xf32, #tpu.memory_space<vmem>>, vector<8x128xf32>
    %1 = math.absf %0 : vector<8x128xf32>
    %cst = arith.constant 1.000000e+00 : f32
    %2 = vector.broadcast %cst : f32 to vector<8x128xf32>
    %3 = arith.cmpf oge, %1, %2 : vector<8x128xf32>
    %4 = arith.extui %3 : vector<8x128xi1> to vector<8x128xi32>
    %5 = arith.sitofp %4 : vector<8x128xi32> to vector<8x128xf32>
    %6 = arith.truncf %5 : vector<8x128xf32> to vector<8x128xbf16>
    %c0_1 = arith.constant 0 : index
    %c0_2 = arith.constant 0 : index
    %7 = vector.load %arg2[%c0_1, %c0_2] : memref<128x32xbf16, #tpu.memory_space<vmem>>, vector<128x32xbf16>
    %cst_3 = arith.constant dense<0.000000e+00> : vector<8x32xf32>
    %8 = tpu.matmul %6, %7, %cst_3 {dimension_numbers = #tpu.dot_dimension_numbers<[1], [0], [0], [1], [0, 0, 1, 1], [], []>} : vector<8x128xbf16>, vector<128x32xbf16>, vector<8x32xf32> -> vector<8x32xf32>
    %cst_4 = arith.constant 5.000000e-01 : f32
    %9 = vector.broadcast %cst_4 : f32 to vector<8x32xf32>
    %10 = arith.cmpf oge, %8, %9 : vector<8x32xf32>
    %11 = arith.extui %10 : vector<8x32xi1> to vector<8x32xi32>
    %12 = arith.sitofp %11 : vector<8x32xi32> to vector<8x32xf32>
    %13 = arith.truncf %12 : vector<8x32xf32> to vector<8x32xbf16>
    %c0_5 = arith.constant 0 : index
    %c0_6 = arith.constant 0 : index
    %14 = vector.load %arg3[%c0_5, %c0_6] : memref<32x4xbf16, #tpu.memory_space<vmem>>, vector<32x4xbf16>
    %cst_7 = arith.constant dense<0.000000e+00> : vector<8x4xf32>
    %15 = tpu.matmul %13, %14, %cst_7 {dimension_numbers = #tpu.dot_dimension_numbers<[1], [0], [0], [1], [0, 0, 1, 1], [], []>} : vector<8x32xbf16>, vector<32x4xbf16>, vector<8x4xf32> -> vector<8x4xf32>
    %cst_8 = arith.constant 7.500000e+00 : f32
    %16 = vector.broadcast %cst_8 : f32 to vector<8x4xf32>
    %17 = arith.cmpf oge, %15, %16 : vector<8x4xf32>
    %18 = arith.extui %17 : vector<8x4xi1> to vector<8x4xi32>
    %19 = arith.sitofp %18 : vector<8x4xi32> to vector<8x4xf32>
    %c0_9 = arith.constant 0 : index
    %c0_10 = arith.constant 0 : index
    %20 = vector.load %arg4[%c0_9, %c0_10] : memref<8x4xf32, #tpu.memory_space<vmem>>, vector<8x4xf32>
    tpu.vector_store %arg4[%c0_9, %c0_10], %19 {strides = array<i32>} : memref<8x4xf32, #tpu.memory_space<vmem>>, vector<8x4xf32>,
    return
  }
  func.func @transform_0(%arg0: i32) -> (i32, i32) {
    %c0_i32 = arith.constant 0 : i32
    %c0_i32_0 = arith.constant 0 : i32
    return %arg0, %c0_i32 : i32, i32
  }
  func.func @transform_1(%arg0: i32) -> (i32, i32) {
    %c0_i32 = arith.constant 0 : i32
    %c0_i32_0 = arith.constant 0 : i32
    %c0_i32_1 = arith.constant 0 : i32
    return %c0_i32, %c0_i32_0 : i32, i32
  }
  func.func @transform_2(%arg0: i32) -> (i32, i32) {
    %c0_i32 = arith.constant 0 : i32
    %c0_i32_0 = arith.constant 0 : i32
    %c0_i32_1 = arith.constant 0 : i32
    return %c0_i32, %c0_i32_0 : i32, i32
  }
  func.func @transform_3(%arg0: i32) -> (i32, i32) {
    %c0_i32 = arith.constant 0 : i32
    %c0_i32_0 = arith.constant 0 : i32
    return %arg0, %c0_i32 : i32, i32
  }
}

</mosaic_0001>

<llo_original>
// kernel: tpu_custom_call.1
$region0: #{tpu_custom_call.1}
  #allocation0 [shape = 'u32[]', space=smem, size = 0x4, offset = 0x4, fixed_abs, tag = 'smem constant byte address 0x4 - core index']
  #allocation1 [shape = 'u32[144,128]{1,0:T(1,128)}', space=vmem, size = 0x12000, scoped, tag = 'internal scratch']
  %s0 = inlined_call_operand.vmem [shape: f32[2,128], index: 0, kind: input, shape index: {}]
  %s1 = inlined_call_operand.vmem [shape: bf16[128,32], index: 1, kind: input, shape index: {}]
  %s2 = inlined_call_operand.vmem [shape: bf16[32,4], index: 2, kind: input, shape index: {}]
  %s3 = inlined_call_operand.hbm [shape: f32[2,4], index: 3, kind: output, shape index: {}]
  %s4 = sld [smem:[#allocation0]]
  $region22: #{tpu_custom_call.1} parent=0
    _
  %s6 = ssub.s32 1, %s4
  %s7 = scalar_select 0, %s6, %s4
  $region1: #{tpu_custom_call.1} parent=0
    #allocation2 [shape = 'u8[4096]{0}', space=vmem, size = 0x1000, scoped, tag = 'output window, operand 0, single buffered']
    #allocation3 [shape = 's32[1]{0}', space=sflag, size = 0x4, scoped, tag = 'scoped memory for tpu_custom_call.1']
    %8 = vsyncpa [#allocation3], 0
    // Predicated region
    $region2: #{tpu_custom_call.1} parent=1 // pred_check
      _
    $region3: #{tpu_custom_call.1} parent=1 // pred_check_branch
      %10 = sbr.rel (0) target = $region5
    $region4: #{tpu_custom_call.1} parent=1 // pred_region
      _
    $region5: #{tpu_custom_call.1} parent=1 // pred_fallthru
      _
    // Predicated region
    $region6: #{tpu_custom_call.1} parent=1 // pred_check
      _
    $region7: #{tpu_custom_call.1} parent=1 // pred_check_branch
      %12 = sbr.rel (0) target = $region9
    $region8: #{tpu_custom_call.1} parent=1 // pred_region
      _
    $region9: #{tpu_custom_call.1} parent=1 // pred_fallthru
      _
    // Predicated region
    $region10: #{tpu_custom_call.1} parent=1 // pred_check
      _
    $region11: #{tpu_custom_call.1} parent=1 // pred_check_branch
      %14 = sbr.rel (0) target = $region13
    $region12: #{tpu_custom_call.1} parent=1 // pred_region
      _
    $region13: #{tpu_custom_call.1} parent=1 // pred_fallthru
      _
    %v16 = vld [vmem:[%s0] sm:$0xff]
    %v17 = vand.u32 2147483647, %v16
    %vm18 = vcmp.ge.f32.partialorder %v17, 1.0
    %v19 = vsel %vm18, 1, 0
    %v20 = vcvt.s32.f32 %v19
    %v21 = vpack.c.bf16 %v20, %v20
    %v22 = vld [vmem:[%s1] sm:$0xf]
    %v23 = vld [vmem:[%s1 + $0x4] sm:$0xf]
    %v24 = vld [vmem:[%s1 + $0x8] sm:$0xf]
    %v25 = vld [vmem:[%s1 + $0xc] sm:$0xf]
    %v26 = vld [vmem:[%s1 + $0x10] sm:$0xf]
    %v27 = vld [vmem:[%s1 + $0x14] sm:$0xf]
    %v28 = vld [vmem:[%s1 + $0x18] sm:$0xf]
    %v29 = vld [vmem:[%s1 + $0x1c] sm:$0xf]
    %v30 = vld [vmem:[%s1 + $0x20] sm:$0xf]
    %v31 = vld [vmem:[%s1 + $0x24] sm:$0xf]
    %v32 = vld [vmem:[%s1 + $0x28] sm:$0xf]
    %v33 = vld [vmem:[%s1 + $0x2c] sm:$0xf]
    %v34 = vld [vmem:[%s1 + $0x30] sm:$0xf]
    %v35 = vld [vmem:[%s1 + $0x34] sm:$0xf]
    %v36 = vld [vmem:[%s1 + $0x38] sm:$0xf]
    %v37 = vld [vmem:[%s1 + $0x3c] sm:$0xf]
    %v54 = vunpack.c.l.b16 %v22
    %v55 = vunpack.c.l.b16 %v23
    %v56 = vunpack.c.l.b16 %v24
    %v57 = vunpack.c.l.b16 %v25
    %v58 = vunpack.c.l.b16 %v26
    %v59 = vunpack.c.l.b16 %v27
    %v60 = vunpack.c.l.b16 %v28
    %v61 = vunpack.c.l.b16 %v29
    %v62 = vunpack.c.l.b16 %v30
    %v63 = vunpack.c.l.b16 %v31
    %v64 = vunpack.c.l.b16 %v32
    %v65 = vunpack.c.l.b16 %v33
    %v66 = vunpack.c.l.b16 %v34
    %v67 = vunpack.c.l.b16 %v35
    %v68 = vunpack.c.l.b16 %v36
    %v69 = vunpack.c.l.b16 %v37
    %v70 = vpack.c.b16 %v55, %v54
    %v71 = vpack.c.b16 %v57, %v56
    %v72 = vpack.c.b16 %v59, %v58
    %v73 = vpack.c.b16 %v61, %v60
    %v74 = vpack.c.b16 %v63, %v62
    %v75 = vpack.c.b16 %v65, %v64
    %v76 = vpack.c.b16 %v67, %v66
    %v77 = vpack.c.b16 %v69, %v68
    %86 = vmatprep.subr.bf16.mxu0 0
    %87 = vmatpush1.bf16.msra.mxu0 %v70
    %88 = vmatprep.subr.bf16.mxu0 0
    %89 = vmatpush1.bf16.msra.mxu0 %v71
    %90 = vmatprep.subr.bf16.mxu0 0
    %91 = vmatpush1.bf16.msra.mxu0 %v72
    %92 = vmatprep.subr.bf16.mxu0 0
    %93 = vmatpush1.bf16.msra.mxu0 %v73
    %94 = vmatprep.subr.bf16.mxu0 0
    %95 = vmatpush1.bf16.msra.mxu0 %v74
    %96 = vmatprep.subr.bf16.mxu0 0
    %97 = vmatpush1.bf16.msra.mxu0 %v75
    %98 = vmatprep.subr.bf16.mxu0 0
    %99 = vmatpush1.bf16.msra.mxu0 %v76
    %100 = vmatprep.subr.bf16.mxu0 0
    %101 = vmatpush1.bf16.msra.mxu0 %v77
    %102 = vmatprep.subr.bf16.mxu0 0
    %103 = vmatpush1.bf16.msra.mxu0 0
    %104 = vmatprep.subr.bf16.mxu0 0
    %105 = vmatpush1.bf16.msra.mxu0 0
    %106 = vmatprep.subr.bf16.mxu0 0
    %107 = vmatpush1.bf16.msra.mxu0 0
    %108 = vmatprep.subr.bf16.mxu0 0
    %109 = vmatpush1.bf16.msra.mxu0 0
    %110 = vmatprep.subr.bf16.mxu0 0
    %111 = vmatpush1.bf16.msra.mxu0 0
    %112 = vmatprep.subr.bf16.mxu0 0
    %113 = vmatpush1.bf16.msra.mxu0 0
    %114 = vmatprep.subr.bf16.mxu0 0
    %115 = vmatpush1.bf16.msra.mxu0 0
    %116 = vmatprep.subr.bf16.mxu0 0
    %117 = vmatpush1.bf16.msra.mxu0 0
    %118 = vmatprep.mubr.bf16.mxu0 0
    %119 = vmatmul.mubr.bf16.gmra.mrb[0].mxu0 %v21
    %v120 = vpop.f32.mrb[0].mxu0
    %v121 = vadd.f32 0.0, %v120
    %v122 = vpop.f32.mrb[0].mxu0
    %v123 = vpop.f32.mrb[0].mxu0
    %v124 = vpop.f32.mrb[0].mxu0
    %125 = vdwg.mxu0
    %vm126 = vcmp.ge.f32.partialorder %v121, 0.5
    %v127 = vsel %vm126, 1, 0
    %v128 = vcvt.s32.f32 %v127
    %v129 = vpack.c.bf16 %v128, %v128
    %v130 = vld [vmem:[%s2] sm:$0xf]
    %v131 = vld [vmem:[%s2 + $0x4] sm:$0xf]
    %v132 = vld [vmem:[%s2 + $0x8] sm:$0xf]
    %v133 = vld [vmem:[%s2 + $0xc] sm:$0xf]
    %v138 = vunpack.c.l.b16 %v130
    %v139 = vunpack.c.l.b16 %v131
    %v140 = vunpack.c.l.b16 %v132
    %v141 = vunpack.c.l.b16 %v133
    %v142 = vpack.c.b16 %v139, %v138
    %v143 = vpack.c.b16 %v141, %v140
    %vm146 = vcmask 261120
    %v148 = vsel %vm146, %v129, 0
    %150 = vmatprep.subr.bf16.mxu0 0
    %151 = vmatpush1.bf16.msra.mxu0 %v142
    %152 = vmatprep.subr.bf16.mxu0 0
    %153 = vmatpush1.bf16.msra.mxu0 %v143
    %154 = vmatprep.subr.bf16.mxu0 0
    %155 = vmatpush1.bf16.msra.mxu0 0
    %156 = vmatprep.subr.bf16.mxu0 0
    %157 = vmatpush1.bf16.msra.mxu0 0
    %158 = vmatprep.subr.bf16.mxu0 0
    %159 = vmatpush1.bf16.msra.mxu0 0
    %160 = vmatprep.subr.bf16.mxu0 0
    %161 = vmatpush1.bf16.msra.mxu0 0
    %162 = vmatprep.subr.bf16.mxu0 0
    %163 = vmatpush1.bf16.msra.mxu0 0
    %164 = vmatprep.subr.bf16.mxu0 0
    %165 = vmatpush1.bf16.msra.mxu0 0
    %166 = vmatprep.subr.bf16.mxu0 0
    %167 = vmatpush1.bf16.msra.mxu0 0
    %168 = vmatprep.subr.bf16.mxu0 0
    %169 = vmatpush1.bf16.msra.mxu0 0
    %170 = vmatprep.subr.bf16.mxu0 0
    %171 = vmatpush1.bf16.msra.mxu0 0
    %172 = vmatprep.subr.bf16.mxu0 0
    %173 = vmatpush1.bf16.msra.mxu0 0
    %174 = vmatprep.subr.bf16.mxu0 0
    %175 = vmatpush1.bf16.msra.mxu0 0
    %176 = vmatprep.subr.bf16.mxu0 0
    %177 = vmatpush1.bf16.msra.mxu0 0
    %178 = vmatprep.subr.bf16.mxu0 0
    %179 = vmatpush1.bf16.msra.mxu0 0
    %180 = vmatprep.subr.bf16.mxu0 0
    %181 = vmatpush1.bf16.msra.mxu0 0
    %182 = vmatprep.mubr.bf16.mxu0 0
    %183 = vmatmul.mubr.bf16.gmra.mrb[0].mxu0 %v148
    %v184 = vpop.f32.mrb[0].mxu0
    %v185 = vadd.f32 0.0, %v184
    %v186 = vpop.f32.mrb[0].mxu0
    %v187 = vpop.f32.mrb[0].mxu0
    %v188 = vpop.f32.mrb[0].mxu0
    %189 = vdwg.mxu0
    %vm190 = vcmp.ge.f32.partialorder %v185, 7.5
    %v191 = vsel %vm190, 1, 0
    %v192 = vcvt.s32.f32 %v191
    %vm193 = vcmask 31744
    %194 = vst.msk [vmem:[#allocation2] sm:$0xff] %vm193, %v192
    // Predicated region
    $region14: #{tpu_custom_call.1} parent=1 // pred_check
      _
    $region15: #{tpu_custom_call.1} parent=1 // pred_check_branch
      %196 = sbr.rel (0) target = $region17
    $region16: #{tpu_custom_call.1} parent=1 // pred_region
      %s198 = ssub.s32 128, 32
      %199 = vsyncadd [#allocation3], %s198
      %s200 = sshll.u32 [#allocation2], 4
      %s201 = int_to_ptr.vmem [resolvable:$true] %s200
      %206 = dma.vmem_to_hbm [thread:$0]  %s201, 32, %s3, [#allocation3], 32, 32, 2
    $region17: #{tpu_custom_call.1} parent=1 // pred_fallthru
      _
    // Predicated region
    $region18: #{tpu_custom_call.1} parent=1 // pred_check
      _
    $region19: #{tpu_custom_call.1} parent=1 // pred_check_branch
      %208 = sbr.rel (0) target = $region21
    $region20: #{tpu_custom_call.1} parent=1 // pred_region
      %209 = dma.done [#allocation3], 128
    $region21: #{tpu_custom_call.1} parent=1 // pred_fallthru
      _
    %210 = vsyncpa [#allocation3], 1

</llo_original>
